<compile_context>
chip_gen: v6e
topology: v6e:2x2x1
jax: 0.10.0
libtpu: 0.0.40
codegen_flags: <defaults>
</compile_context>

<pallas_src>
import math

import jax
import jax.numpy as jnp
import numpy as np
from jax.experimental import pallas as pl
from jax.experimental.pallas import tpu as pltpu


def fusion_kernel(text_ref, img_ref, wpad_ref, tpad_ref, b_ref, out_ref):
    """out = img @ W_pad + text @ T_pad + b_pad  (single lane-dense store)."""
    acc = jnp.dot(img_ref[...], wpad_ref[...],
                  preferred_element_type=jnp.float32)          # (TB, 2E) f32
    acc = acc + jnp.dot(text_ref[...], tpad_ref[...],
                        preferred_element_type=jnp.float32)    # + exact text pass-through
    acc = acc + b_ref[...]                                     # (1, 2E) f32 bias
    out_ref[...] = acc.astype(out_ref.dtype)


def pack_fusion_params(params, *, compute_dtype=None):
    """One-time packing of nn.MultiheadAttention params into padded fused form.

    nn.Linear computes y = x @ W.T + b, so with v = img @ Wv.T + bv and
    out = v @ Wo.T + bo:
        out = img @ (Wv.T @ Wo.T) + (bv @ Wo.T + bo).
    The fused weight is right-padded with zeros and paired with an
    identity-padded matrix for the text pass-through, so the kernel writes the
    full (B, 2E) output with one unmasked store and no lane concat.
    """
    E = params["wv"].shape[0]
    dt = compute_dtype if compute_dtype is not None else params["wv"].dtype

    wv = params["wv"].astype(jnp.float32)
    wo = params["wo"].astype(jnp.float32)
    bv = params["bv"].astype(jnp.float32)
    bo = params["bo"].astype(jnp.float32)

    w_fused = jnp.dot(wv.T, wo.T)                               # (E, E), (in, out)
    b_fused = jnp.dot(bv, wo.T) + bo                            # (E,)

    zeros = jnp.zeros((E, E), jnp.float32)
    w_pad = jnp.concatenate([w_fused, zeros], axis=1).astype(dt)          # (E, 2E)
    t_pad = jnp.concatenate([zeros, jnp.eye(E, dtype=jnp.float32)],
                            axis=1).astype(dt)                            # (E, 2E)
    b_pad = jnp.concatenate([b_fused, jnp.zeros((E,), jnp.float32)]
                            ).reshape(1, 2 * E)                           # f32 bias
    return w_pad, t_pad, b_pad


def _pick_tile(B, E, itemsize, *, cap=2048, stream_budget=12 << 20):
    """Batch tile: big enough that per-step DMA >> 0.35us fixed pipeline cost,
    VMEM-budgeted (double-buffered in+out streams <= stream_budget), and an
    even grid length >= 2 whenever B is split (v7x dual-TensorCore)."""
    row_bytes = 2 * (4 * E) * itemsize          # double-buffered text+img+out per row
    tb = min(cap, max(8, stream_budget // row_bytes))
    tb = (tb // 8) * 8                          # sublane multiple
    if B <= tb:
        return B                                # single full-batch tile
    n = pl.cdiv(B, tb)
    if n % 2:
        n += 1                                  # even grid -> both TCs on v7x
    tb = ((pl.cdiv(B, n) + 7) // 8) * 8
    return tb


def multiple_modality_fusion(text, image, w_pad, t_pad, b_pad, *, heads=8):
    """Pallas forward.  `heads` kept for API fidelity; with seq_len == 1 the
    result is independent of the head partition."""
    del heads
    B, E = text.shape
    assert image.shape == (B, E), (image.shape, text.shape)

    TB = _pick_tile(B, E, text.dtype.itemsize)
    grid = (pl.cdiv(B, TB),)                    # ragged last tile is masked by Pallas

    return pl.pallas_call(
        fusion_kernel,
        out_shape=jax.ShapeDtypeStruct((B, 2 * E), text.dtype),
        grid=grid,
        in_specs=[
            pl.BlockSpec((TB, E), lambda i: (i, 0)),          # text
            pl.BlockSpec((TB, E), lambda i: (i, 0)),          # image
            pl.BlockSpec((E, 2 * E), lambda i: (0, 0)),       # W_pad  (resident)
            pl.BlockSpec((E, 2 * E), lambda i: (0, 0)),       # T_pad  (resident)
            pl.BlockSpec((1, 2 * E), lambda i: (0, 0)),       # b_pad  (resident)
        ],
        out_specs=pl.BlockSpec((TB, 2 * E), lambda i: (i, 0)),
        compiler_params=pltpu.CompilerParams(
            dimension_semantics=("parallel",),
            vmem_limit_bytes=32 * 1024 * 1024),               # v5e default is 16 MiB
    )(text, image, w_pad, t_pad, b_pad)


def reference_forward(text, image, params, *, heads):
    """Pure-JAX reference mirroring the PyTorch module (eval mode, unfused)."""
    B, E = text.shape
    hd = E // heads
    q = text @ params["wq"].T + params["bq"]
    k = image @ params["wk"].T + params["bk"]
    v = image @ params["wv"].T + params["bv"]
    qh = q.reshape(B, heads, hd)
    kh = k.reshape(B, heads, hd)
    vh = v.reshape(B, heads, hd)
    scores = (qh * kh).sum(-1, keepdims=True) / math.sqrt(hd)     # (B, H, 1)
    w = jax.nn.softmax(scores[..., None], axis=-1)[..., 0]        # == 1.0
    attn = (w * vh).reshape(B, E)
    out = attn @ params["wo"].T + params["bo"]
    return jnp.concatenate([out, text], axis=1)


if __name__ == "__main__":
    B, E, H = 8, 64, 8  # small shapes consistent with the module (E % H == 0)

    key = jax.random.PRNGKey(0)
    keys = jax.random.split(key, 12)
    bound = 1.0 / math.sqrt(E)
    params = {
        "wq": jax.random.uniform(keys[0], (E, E), jnp.float32, -bound, bound),
        "wk": jax.random.uniform(keys[1], (E, E), jnp.float32, -bound, bound),
        "wv": jax.random.uniform(keys[2], (E, E), jnp.float32, -bound, bound),
        "wo": jax.random.uniform(keys[3], (E, E), jnp.float32, -bound, bound),
        "bq": jax.random.uniform(keys[4], (E,), jnp.float32, -bound, bound),
        "bk": jax.random.uniform(keys[5], (E,), jnp.float32, -bound, bound),
        "bv": jax.random.uniform(keys[6], (E,), jnp.float32, -bound, bound),
        "bo": jax.random.uniform(keys[7], (E,), jnp.float32, -bound, bound),
    }
    text_features = jax.random.normal(keys[8], (B, E), jnp.float32)
    image_features = jax.random.normal(keys[9], (B, E), jnp.float32)

    # One-time parameter packing (kept out of the per-call path).
    w_pad, t_pad, b_pad = pack_fusion_params(params)
    w_pad, t_pad, b_pad = jax.block_until_ready((w_pad, t_pad, b_pad))

    out = multiple_modality_fusion(text_features, image_features,
                                   w_pad, t_pad, b_pad, heads=H)
    out = jax.block_until_ready(out)

    ref = reference_forward(text_features, image_features, params, heads=H)
    assert out.shape == (B, 2 * E), out.shape
    np.testing.assert_allclose(np.asarray(out), np.asarray(ref),
                               atol=1e-5, rtol=1e-5)

    print("KERNEL_OK")
</pallas_src>

<mosaic_0001>
module attributes {stable_mosaic.version = 11 : i64} {
  func.func @fusion_kernel(%arg0: i32, %arg1: memref<8x64xf32, #tpu.memory_space<vmem>>, %arg2: memref<8x64xf32, #tpu.memory_space<vmem>>, %arg3: memref<64x128xf32, #tpu.memory_space<vmem>>, %arg4: memref<64x128xf32, #tpu.memory_space<vmem>>, %arg5: memref<1x128xf32, #tpu.memory_space<vmem>>, %arg6: memref<8x128xf32, #tpu.memory_space<vmem>>) attributes {dimension_semantics = [#tpu.dimension_semantics<parallel>], iteration_bounds = array<i64: 1>, scalar_prefetch = 0 : i64, scratch_operands = 0 : i64, tpu.core_type = #tpu.core_type<tc>, window_params = [{transform_indices = @transform_0, window_bounds = array<i64: 8, 64>}, {transform_indices = @transform_1, window_bounds = array<i64: 8, 64>}, {pipeline_mode = #tpu.pipeline_mode<synchronous>, transform_indices = @transform_2, window_bounds = array<i64: 64, 128>}, {pipeline_mode = #tpu.pipeline_mode<synchronous>, transform_indices = @transform_3, window_bounds = array<i64: 64, 128>}, {pipeline_mode = #tpu.pipeline_mode<synchronous>, transform_indices = @transform_4, window_bounds = array<i64: 1, 128>}, {transform_indices = @transform_5, window_bounds = array<i64: 8, 128>}]} {
    %c0 = arith.constant 0 : index
    %c0_0 = arith.constant 0 : index
    %0 = vector.load %arg2[%c0, %c0_0] : memref<8x64xf32, #tpu.memory_space<vmem>>, vector<8x64xf32>
    %c0_1 = arith.constant 0 : index
    %c0_2 = arith.constant 0 : index
    %1 = vector.load %arg3[%c0_1, %c0_2] : memref<64x128xf32, #tpu.memory_space<vmem>>, vector<64x128xf32>
    %cst = arith.constant dense<0.000000e+00> : vector<8x128xf32>
    %2 = tpu.matmul %0, %1, %cst {dimension_numbers = #tpu.dot_dimension_numbers<[1], [0], [0], [1], [0, 0, 1, 1], [], []>} : vector<8x64xf32>, vector<64x128xf32>, vector<8x128xf32> -> vector<8x128xf32>
    %c0_3 = arith.constant 0 : index
    %c0_4 = arith.constant 0 : index
    %3 = vector.load %arg1[%c0_3, %c0_4] : memref<8x64xf32, #tpu.memory_space<vmem>>, vector<8x64xf32>
    %c0_5 = arith.constant 0 : index
    %c0_6 = arith.constant 0 : index
    %4 = vector.load %arg4[%c0_5, %c0_6] : memref<64x128xf32, #tpu.memory_space<vmem>>, vector<64x128xf32>
    %cst_7 = arith.constant dense<0.000000e+00> : vector<8x128xf32>
    %5 = tpu.matmul %3, %4, %cst_7 {dimension_numbers = #tpu.dot_dimension_numbers<[1], [0], [0], [1], [0, 0, 1, 1], [], []>} : vector<8x64xf32>, vector<64x128xf32>, vector<8x128xf32> -> vector<8x128xf32>
    %6 = arith.addf %2, %5 : vector<8x128xf32>
    %c0_8 = arith.constant 0 : index
    %c0_9 = arith.constant 0 : index
    %7 = vector.load %arg5[%c0_8, %c0_9] : memref<1x128xf32, #tpu.memory_space<vmem>>, vector<1x128xf32>
    %8 = vector.broadcast %7 : vector<1x128xf32> to vector<8x128xf32>
    %9 = arith.addf %6, %8 : vector<8x128xf32>
    %c0_10 = arith.constant 0 : index
    %c0_11 = arith.constant 0 : index
    %10 = vector.load %arg6[%c0_10, %c0_11] : memref<8x128xf32, #tpu.memory_space<vmem>>, vector<8x128xf32>
    tpu.vector_store %arg6[%c0_10, %c0_11], %9 {strides = array<i32>} : memref<8x128xf32, #tpu.memory_space<vmem>>, vector<8x128xf32>,
    return
  }
  func.func @transform_0(%arg0: i32) -> (i32, i32) {
    %c0_i32 = arith.constant 0 : i32
    %c0_i32_0 = arith.constant 0 : i32
    return %arg0, %c0_i32 : i32, i32
  }
  func.func @transform_1(%arg0: i32) -> (i32, i32) {
    %c0_i32 = arith.constant 0 : i32
    %c0_i32_0 = arith.constant 0 : i32
    return %arg0, %c0_i32 : i32, i32
  }
  func.func @transform_2(%arg0: i32) -> (i32, i32) {
    %c0_i32 = arith.constant 0 : i32
    %c0_i32_0 = arith.constant 0 : i32
    %c0_i32_1 = arith.constant 0 : i32
    return %c0_i32, %c0_i32_0 : i32, i32
  }
  func.func @transform_3(%arg0: i32) -> (i32, i32) {
    %c0_i32 = arith.constant 0 : i32
    %c0_i32_0 = arith.constant 0 : i32
    %c0_i32_1 = arith.constant 0 : i32
    return %c0_i32, %c0_i32_0 : i32, i32
  }
  func.func @transform_4(%arg0: i32) -> (i32, i32) {
    %c0_i32 = arith.constant 0 : i32
    %c0_i32_0 = arith.constant 0 : i32
    %c0_i32_1 = arith.constant 0 : i32
    return %c0_i32, %c0_i32_0 : i32, i32
  }
  func.func @transform_5(%arg0: i32) -> (i32, i32) {
    %c0_i32 = arith.constant 0 : i32
    %c0_i32_0 = arith.constant 0 : i32
    return %arg0, %c0_i32 : i32, i32
  }
}

</mosaic_0001>

<llo_original>
// kernel: tpu_custom_call.1
$region0: #{tpu_custom_call.1}
  #allocation0 [shape = 'u32[]', space=smem, size = 0x4, offset = 0x4, fixed_abs, tag = 'smem constant byte address 0x4 - core index']
  #allocation1 [shape = 'u32[144,128]{1,0:T(1,128)}', space=vmem, size = 0x12000, scoped, tag = 'internal scratch']
  %s0 = inlined_call_operand.hbm [shape: f32[8,64], index: 0, kind: input, shape index: {}]
  %s1 = inlined_call_operand.hbm [shape: f32[8,64], index: 1, kind: input, shape index: {}]
  %s2 = inlined_call_operand.hbm [shape: f32[64,128], index: 2, kind: input, shape index: {}]
  %s3 = inlined_call_operand.hbm [shape: f32[64,128], index: 3, kind: input, shape index: {}]
  %s4 = inlined_call_operand.vmem [shape: f32[1,128], index: 4, kind: input, shape index: {}]
  %s5 = inlined_call_operand.hbm [shape: f32[8,128], index: 5, kind: output, shape index: {}]
  %s6 = sld [smem:[#allocation0]]
  $region46: #{tpu_custom_call.1} parent=0
    _
  %s8 = ssub.s32 1, %s6
  %s9 = scalar_select 0, %s8, %s6
  $region1: #{tpu_custom_call.1} parent=0
    #allocation2 [shape = 'u8[4096]{0}', space=vmem, size = 0x1000, scoped, tag = 'input window, operand 0, single buffered']
    #allocation3 [shape = 's32[1]{0}', space=sflag, size = 0x4, scoped, tag = 'scoped memory for tpu_custom_call.1']
    #allocation4 [shape = 's32[1]{0}', space=sflag, size = 0x4, scoped, tag = 'scoped memory for tpu_custom_call.1']
    #allocation5 [shape = 'u8[4096]{0}', space=vmem, size = 0x1000, scoped, tag = 'input window, operand 1, single buffered']
    #allocation6 [shape = 's32[1]{0}', space=sflag, size = 0x4, scoped, tag = 'scoped memory for tpu_custom_call.1']
    #allocation7 [shape = 'u8[32768]{0}', space=vmem, size = 0x8000, scoped, tag = 'input window, operand 2, single buffered']
    #allocation8 [shape = 'u8[32768]{0}', space=vmem, size = 0x8000, scoped, tag = 'input window, operand 3, single buffered']
    #allocation9 [shape = 's32[1]{0}', space=sflag, size = 0x4, scoped, tag = 'scoped memory for tpu_custom_call.1']
    #allocation10 [shape = 'u8[4096]{0}', space=vmem, size = 0x1000, scoped, tag = 'output window, operand 0, single buffered']
    %10 = vsyncpa [#allocation3], 0
    %11 = vsyncpa [#allocation6], 0
    %12 = vsyncpa [#allocation9], 0
    %13 = vsyncpa [#allocation4], 0
    // Predicated region
    $region2: #{tpu_custom_call.1} parent=1 // pred_check
      _
    $region3: #{tpu_custom_call.1} parent=1 // pred_check_branch
      %15 = sbr.rel (0) target = $region5
    $region4: #{tpu_custom_call.1} parent=1 // pred_region
      %s17 = ssub.s32 128, 128
      %18 = vsyncadd [#allocation3], %s17
      %s20 = sshll.u32 [#allocation2], 4
      %s21 = int_to_ptr.vmem [resolvable:$true] %s20
      %23 = dma.hbm_to_vmem [thread:$0]  %s0, 128, %s21, [#allocation3]
    $region5: #{tpu_custom_call.1} parent=1 // pred_fallthru
      _
    // Predicated region
    $region6: #{tpu_custom_call.1} parent=1 // pred_check
      _
    $region7: #{tpu_custom_call.1} parent=1 // pred_check_branch
      %25 = sbr.rel (0) target = $region9
    $region8: #{tpu_custom_call.1} parent=1 // pred_region
      %s27 = ssub.s32 128, 128
      %28 = vsyncadd [#allocation6], %s27
      %s30 = sshll.u32 [#allocation5], 4
      %s31 = int_to_ptr.vmem [resolvable:$true] %s30
      %33 = dma.hbm_to_vmem [thread:$0]  %s1, 128, %s31, [#allocation6]
    $region9: #{tpu_custom_call.1} parent=1 // pred_fallthru
      _
    // Predicated region
    $region10: #{tpu_custom_call.1} parent=1 // pred_check
      _
    $region11: #{tpu_custom_call.1} parent=1 // pred_check_branch
      %35 = sbr.rel (0) target = $region13
    $region12: #{tpu_custom_call.1} parent=1 // pred_region
      %s37 = ssub.s32 1024, 1024
      %38 = vsyncadd [#allocation6], %s37
      %s39 = sshll.u32 [#allocation7], 4
      %s40 = int_to_ptr.vmem [resolvable:$true] %s39
      %45 = dma.hbm_to_vmem [thread:$0]  %s2, 1024, %s40, [#allocation6], 128, 128, 8
    $region13: #{tpu_custom_call.1} parent=1 // pred_fallthru
      _
    // Predicated region
    $region14: #{tpu_custom_call.1} parent=1 // pred_check
      _
    $region15: #{tpu_custom_call.1} parent=1 // pred_check_branch
      %47 = sbr.rel (0) target = $region17
    $region16: #{tpu_custom_call.1} parent=1 // pred_region
      %s49 = ssub.s32 1024, 1024
      %50 = vsyncadd [#allocation9], %s49
      %s51 = sshll.u32 [#allocation8], 4
      %s52 = int_to_ptr.vmem [resolvable:$true] %s51
      %57 = dma.hbm_to_vmem [thread:$0]  %s3, 1024, %s52, [#allocation9], 128, 128, 8
    $region17: #{tpu_custom_call.1} parent=1 // pred_fallthru
      _
    // Predicated region
    $region18: #{tpu_custom_call.1} parent=1 // pred_check
      _
    $region19: #{tpu_custom_call.1} parent=1 // pred_check_branch
      %59 = sbr.rel (0) target = $region21
    $region20: #{tpu_custom_call.1} parent=1 // pred_region
      _
    $region21: #{tpu_custom_call.1} parent=1 // pred_fallthru
      _
    // Predicated region
    $region22: #{tpu_custom_call.1} parent=1 // pred_check
      _
    $region23: #{tpu_custom_call.1} parent=1 // pred_check_branch
      %61 = sbr.rel (0) target = $region25
    $region24: #{tpu_custom_call.1} parent=1 // pred_region
      %62 = dma.done [#allocation3], 128
    $region25: #{tpu_custom_call.1} parent=1 // pred_fallthru
      _
    // Predicated region
    $region26: #{tpu_custom_call.1} parent=1 // pred_check
      _
    $region27: #{tpu_custom_call.1} parent=1 // pred_check_branch
      %64 = sbr.rel (0) target = $region29
    $region28: #{tpu_custom_call.1} parent=1 // pred_region
      %65 = dma.done [#allocation6], 128
    $region29: #{tpu_custom_call.1} parent=1 // pred_fallthru
      _
    // Predicated region
    $region30: #{tpu_custom_call.1} parent=1 // pred_check
      _
    $region31: #{tpu_custom_call.1} parent=1 // pred_check_branch
      %67 = sbr.rel (0) target = $region33
    $region32: #{tpu_custom_call.1} parent=1 // pred_region
      %68 = dma.done [#allocation6], 1024
    $region33: #{tpu_custom_call.1} parent=1 // pred_fallthru
      _
    // Predicated region
    $region34: #{tpu_custom_call.1} parent=1 // pred_check
      _
    $region35: #{tpu_custom_call.1} parent=1 // pred_check_branch
      %70 = sbr.rel (0) target = $region37
    $region36: #{tpu_custom_call.1} parent=1 // pred_region
      %71 = dma.done [#allocation9], 1024
    $region37: #{tpu_custom_call.1} parent=1 // pred_fallthru
      _
    %v72 = vld [vmem:[#allocation5] sm:$0xff]
    %v73 = vld [vmem:[#allocation7] sm:$0xff]
    %v74 = vld [vmem:[#allocation7 + $0x8] sm:$0xff]
    %v75 = vld [vmem:[#allocation7 + $0x10] sm:$0xff]
    %v76 = vld [vmem:[#allocation7 + $0x18] sm:$0xff]
    %v77 = vld [vmem:[#allocation7 + $0x20] sm:$0xff]
    %v78 = vld [vmem:[#allocation7 + $0x28] sm:$0xff]
    %v79 = vld [vmem:[#allocation7 + $0x30] sm:$0xff]
    %v80 = vld [vmem:[#allocation7 + $0x38] sm:$0xff]
    %v81 = vld [vmem:[#allocation2] sm:$0xff]
    %v82 = vld [vmem:[#allocation8] sm:$0xff]
    %v83 = vld [vmem:[#allocation8 + $0x8] sm:$0xff]
    %v84 = vld [vmem:[#allocation8 + $0x10] sm:$0xff]
    %v85 = vld [vmem:[#allocation8 + $0x18] sm:$0xff]
    %v86 = vld [vmem:[#allocation8 + $0x20] sm:$0xff]
    %v87 = vld [vmem:[#allocation8 + $0x28] sm:$0xff]
    %v88 = vld [vmem:[#allocation8 + $0x30] sm:$0xff]
    %v89 = vld [vmem:[#allocation8 + $0x38] sm:$0xff]
    %vm90 = vcmask 523264
    %v92 = vsel %vm90, %v81, 0
    %94 = vmatprep.subr.mxu0 0.0
    %95 = vmatpush1.msra.mxu0 0.0
    %96 = vmatprep.subr.mxu0 0.0
    %97 = vmatpush1.msra.mxu0 0.0
    %98 = vmatprep.subr.mxu0 0.0
    %99 = vmatpush1.msra.mxu0 0.0
    %100 = vmatprep.subr.mxu0 0.0
    %101 = vmatpush1.msra.mxu0 0.0
    %102 = vmatprep.subr.mxu0 0.0
    %103 = vmatpush1.msra.mxu0 0.0
    %104 = vmatprep.subr.mxu0 0.0
    %105 = vmatpush1.msra.mxu0 0.0
    %106 = vmatprep.subr.mxu0 0.0
    %107 = vmatpush1.msra.mxu0 0.0
    %108 = vmatprep.subr.mxu0 0.0
    %109 = vmatpush1.msra.mxu0 0.0
    %110 = vmatprep.subr.mxu0 0.0
    %111 = vmatpush1.msra.mxu0 %v89
    %112 = vmatprep.subr.mxu0 0.0
    %113 = vmatpush1.msra.mxu0 %v88
    %114 = vmatprep.subr.mxu0 0.0
    %115 = vmatpush1.msra.mxu0 %v87
    %116 = vmatprep.subr.mxu0 0.0
    %117 = vmatpush1.msra.mxu0 %v86
    %118 = vmatprep.subr.mxu0 0.0
    %119 = vmatpush1.msra.mxu0 %v85
    %120 = vmatprep.subr.mxu0 0.0
    %121 = vmatpush1.msra.mxu0 %v84
    %122 = vmatprep.subr.mxu0 0.0
    %123 = vmatpush1.msra.mxu0 %v83
    %124 = vmatprep.subr.mxu0 0.0
    %125 = vmatpush1.msra.mxu0 %v82
    %126 = vmatprep.subr.mxu0 0.0
    %127 = vmatpush2.msra.mxu0 0.0
    %128 = vmatprep.subr.mxu0 0.0
    %129 = vmatpush2.msra.mxu0 0.0
    %130 = vmatprep.subr.mxu0 0.0
    %131 = vmatpush2.msra.mxu0 0.0
    %132 = vmatprep.subr.mxu0 0.0
    %133 = vmatpush2.msra.mxu0 0.0
    %134 = vmatprep.subr.mxu0 0.0
    %135 = vmatpush2.msra.mxu0 0.0
    %136 = vmatprep.subr.mxu0 0.0
    %137 = vmatpush2.msra.mxu0 0.0
    %138 = vmatprep.subr.mxu0 0.0
    %139 = vmatpush2.msra.mxu0 0.0
    %140 = vmatprep.subr.mxu0 0.0
    %141 = vmatpush2.msra.mxu0 0.0
    %142 = vmatprep.subr.mxu0 0.0
    %143 = vmatpush2.msra.mxu0 0.0
    %144 = vmatprep.subr.mxu0 0.0
    %145 = vmatpush2.msra.mxu0 0.0
    %146 = vmatprep.subr.mxu0 0.0
    %147 = vmatpush2.msra.mxu0 0.0
    %148 = vmatprep.subr.mxu0 0.0
    %149 = vmatpush2.msra.mxu0 0.0
    %150 = vmatprep.subr.mxu0 0.0
    %151 = vmatpush2.msra.mxu0 0.0
    %152 = vmatprep.subr.mxu0 0.0
    %153 = vmatpush2.msra.mxu0 0.0
    %154 = vmatprep.subr.mxu0 0.0
    %155 = vmatpush2.msra.mxu0 0.0
    %156 = vmatprep.subr.mxu0 0.0
    %157 = vmatpush2.msra.mxu0 0.0
    %158 = vmatprep.mubr.f32.mxu0 0.0
    %159 = vmatmul.mubr.f32.gmra.mxu0 %v92
    %v160 = vpop.f32.mrf.mxu0
    %v161 = vadd.f32 0.0, %v160
    %v162 = vpop.f32.mrf.mxu0
    %163 = vdwg.mxu0
    %v165 = vsel %vm90, %v72, 0
    %167 = vmatprep.subr.mxu0 0.0
    %168 = vmatpush1.msra.mxu0 0.0
    %169 = vmatprep.subr.mxu0 0.0
    %170 = vmatpush1.msra.mxu0 0.0
    %171 = vmatprep.subr.mxu0 0.0
    %172 = vmatpush1.msra.mxu0 0.0
    %173 = vmatprep.subr.mxu0 0.0
    %174 = vmatpush1.msra.mxu0 0.0
    %175 = vmatprep.subr.mxu0 0.0
    %176 = vmatpush1.msra.mxu0 0.0
    %177 = vmatprep.subr.mxu0 0.0
    %178 = vmatpush1.msra.mxu0 0.0
    %179 = vmatprep.subr.mxu0 0.0
    %180 = vmatpush1.msra.mxu0 0.0
    %181 = vmatprep.subr.mxu0 0.0
    %182 = vmatpush1.msra.mxu0 0.0
    %183 = vmatprep.subr.mxu0 0.0
    %184 = vmatpush1.msra.mxu0 %v80
    %185 = vmatprep.subr.mxu0 0.0
    %186 = vmatpush1.msra.mxu0 %v79
    %187 = vmatprep.subr.mxu0 0.0
    %188 = vmatpush1.msra.mxu0 %v78
    %189 = vmatprep.subr.mxu0 0.0
    %190 = vmatpush1.msra.mxu0 %v77
    %191 = vmatprep.subr.mxu0 0.0
    %192 = vmatpush1.msra.mxu0 %v76
    %193 = vmatprep.subr.mxu0 0.0
    %194 = vmatpush1.msra.mxu0 %v75
    %195 = vmatprep.subr.mxu0 0.0
    %196 = vmatpush1.msra.mxu0 %v74
    %197 = vmatprep.subr.mxu0 0.0
    %198 = vmatpush1.msra.mxu0 %v73
    %199 = vmatprep.subr.mxu0 0.0
    %200 = vmatpush2.msra.mxu0 0.0
    %201 = vmatprep.subr.mxu0 0.0
    %202 = vmatpush2.msra.mxu0 0.0
    %203 = vmatprep.subr.mxu0 0.0
    %204 = vmatpush2.msra.mxu0 0.0
    %205 = vmatprep.subr.mxu0 0.0
    %206 = vmatpush2.msra.mxu0 0.0
    %207 = vmatprep.subr.mxu0 0.0
    %208 = vmatpush2.msra.mxu0 0.0
    %209 = vmatprep.subr.mxu0 0.0
    %210 = vmatpush2.msra.mxu0 0.0
    %211 = vmatprep.subr.mxu0 0.0
    %212 = vmatpush2.msra.mxu0 0.0
    %213 = vmatprep.subr.mxu0 0.0
    %214 = vmatpush2.msra.mxu0 0.0
    %215 = vmatprep.subr.mxu0 0.0
    %216 = vmatpush2.msra.mxu0 0.0
    %217 = vmatprep.subr.mxu0 0.0
    %218 = vmatpush2.msra.mxu0 0.0
    %219 = vmatprep.subr.mxu0 0.0
    %220 = vmatpush2.msra.mxu0 0.0
    %221 = vmatprep.subr.mxu0 0.0
    %222 = vmatpush2.msra.mxu0 0.0
    %223 = vmatprep.subr.mxu0 0.0
    %224 = vmatpush2.msra.mxu0 0.0
    %225 = vmatprep.subr.mxu0 0.0
    %226 = vmatpush2.msra.mxu0 0.0
    %227 = vmatprep.subr.mxu0 0.0
    %228 = vmatpush2.msra.mxu0 0.0
    %229 = vmatprep.subr.mxu0 0.0
    %230 = vmatpush2.msra.mxu0 0.0
    %231 = vmatprep.mubr.f32.mxu0 0.0
    %232 = vmatmul.mubr.f32.gmra.mxu0 %v165
    %v233 = vpop.f32.mrf.mxu0
    %v234 = vadd.f32 %v161, %v233
    %v235 = vpop.f32.mrf.mxu0
    %236 = vdwg.mxu0
    %v237 = vld [vmem:[%s4] sm:$0x1]
    %v239 = vlaneseq
    %v240 = vshrl.u32 %v239, 7
    %v241 = vsub.s32 0, %v240
    %v242 = vrot.slane %v237, %v241
    %v244 = vadd.f32 %v234, %v242
    %245 = vst [vmem:[#allocation10] sm:$0xff] %v244
    // Predicated region
    $region38: #{tpu_custom_call.1} parent=1 // pred_check
      _
    $region39: #{tpu_custom_call.1} parent=1 // pred_check_branch
      %247 = sbr.rel (0) target = $region41
    $region40: #{tpu_custom_call.1} parent=1 // pred_region
      %s249 = ssub.s32 128, 128
      %250 = vsyncadd [#allocation4], %s249
      %s252 = sshll.u32 [#allocation10], 4
      %s253 = int_to_ptr.vmem [resolvable:$true] %s252
      %255 = dma.vmem_to_hbm [thread:$0]  %s253, 128, %s5, [#allocation4]
    $region41: #{tpu_custom_call.1} parent=1 // pred_fallthru
      _
    // Predicated region
    $region42: #{tpu_custom_call.1} parent=1 // pred_check
      _
    $region43: #{tpu_custom_call.1} parent=1 // pred_check_branch
      %257 = sbr.rel (0) target = $region45
    $region44: #{tpu_custom_call.1} parent=1 // pred_region
      %258 = dma.done [#allocation4], 128
    $region45: #{tpu_custom_call.1} parent=1 // pred_fallthru
      _
    %259 = vsyncpa [#allocation3], 1
    %260 = vsyncpa [#allocation6], 1
    %261 = vsyncpa [#allocation9], 1
    %262 = vsyncpa [#allocation4], 1

</llo_original>
